<compile_context>
chip_gen: v6e
topology: v6e:2x2x1
jax: 0.10.0
libtpu: 0.0.40
codegen_flags: <defaults>
</compile_context>

<pallas_src>
import functools

import jax
import jax.numpy as jnp
import numpy as np
from jax.experimental import pallas as pl
from jax.experimental.pallas import tpu as pltpu

CLASSES_WEIGHTS = np.log2(
    [6678.667, 17.826, 1252.25, 5.759, 17.826, 166.967, 313.062, 385.308,
     1252.25, 70.056, 141.099, 801.44, 36.363, 801.44, 572.457, 626.125,
     871.13, 48.396, 3.806, 910.727, 2.109, 2862.286, 67.01, 1252.25,
     690.897, 589.294, 36.899, 63.809, 22.238, 47.933, 4.093, 159.016,
     572.457, 333.933]
).astype(np.float32)

NUM_CLASSES = CLASSES_WEIGHTS.shape[0]  # 34

_MAX_TILE_ROWS = 8192   # packed rows per tile; 2 arrays x 2 bufs x 8192 x 128 x 4B = 16 MiB
_N_SPLITS = 2           # "parallel" grid axis; uses both TensorCores on v7x


def _round_up(v, m):
    return ((v + m - 1) // m) * m


def _cdiv(a, b):
    return -(-a // b)


def _combo_loss_kernel(x_ref, y_ref, w_ref, seg_ref,
                       bce_ref, wbce_ref, fb_ref,
                       *, pack, tiles_per_split, total_rows, needs_mask):
    i = pl.program_id(0)          # "parallel" split (one per TensorCore on v7x)
    j = pl.program_id(1)          # "arbitrary" tile index within the split

    # Output blocks double as per-split accumulators (block index constant in j).
    @pl.when(j == 0)
    def _init():
        bce_ref[...] = jnp.zeros_like(bce_ref)
        wbce_ref[...] = jnp.zeros_like(wbce_ref)
        fb_ref[...] = jnp.zeros_like(fb_ref)

    x = x_ref[...].astype(jnp.float32)      # (T, W) packed logits
    y = y_ref[...].astype(jnp.float32)      # (T, W) packed multi-hot targets
    w = w_ref[...]                          # (1, W) tiled class weights (f32)

    if needs_mask:
        # Tail / duplicate tiles: x=-1e4, y=0 contribute exactly zero to every
        # accumulated quantity (softplus(-1e4)=0, y*softplus(1e4)=0, sigmoid=0).
        t_rows = x_ref.shape[0]
        row0 = (i * tiles_per_split + j) * t_rows
        rid = row0 + jax.lax.broadcasted_iota(jnp.int32, (t_rows, 1), 0)
        valid = rid < total_rows
        x = jnp.where(valid, x, -1e4)
        y = jnp.where(valid, y, 0.0)

    # Numerically stable softplus pair; t is reused for the sigmoid below.
    t = jnp.exp(-jnp.abs(x))
    sp_pos = jnp.maximum(x, 0.0) + jnp.log1p(t)     # softplus(x)
    sp_neg = sp_pos - x                             # softplus(-x)

    a = y * sp_neg                   # -y * log(sigmoid(x))
    b = (1.0 - y) * sp_pos           # -(1-y) * log(1 - sigmoid(x))
    wa = w * a
    wb = w * b

    # Single full-tile reductions (no (T,1) row-sum chain).
    bce_ref[...] += jnp.sum(wa + b, keepdims=True)      # pos-weighted BCE sum
    wbce_ref[...] += jnp.sum(wa + wb, keepdims=True)    # class-weighted BCE sum

    # sigmoid(x) = [x >= 0 ? 1 : t] / (1 + t), with t = exp(-|x|).
    p = jnp.where(x >= 0.0, 1.0, t) * pl.reciprocal(1.0 + t, approx=True)

    eps = 1e-8
    py = p * y
    if pack == 1:
        tp = jnp.sum(py, axis=1, keepdims=True)          # (T, 1)
        ps = jnp.sum(p, axis=1, keepdims=True)
        ys = jnp.sum(y, axis=1, keepdims=True)
        fb_part = jnp.sum(2.0 * tp / (ps + ys + eps), keepdims=True)
    else:
        fb_part = jnp.zeros((1, 1), jnp.float32)
        for s in range(pack):                            # static unroll (<= 3)
            m = seg_ref[s:s + 1, :]                      # (1, W) segment mask
            tp = jnp.sum(py * m, axis=1, keepdims=True)
            ps = jnp.sum(p * m, axis=1, keepdims=True)
            ys = jnp.sum(y * m, axis=1, keepdims=True)
            fb_part += jnp.sum(2.0 * tp / (ps + ys + eps), keepdims=True)
    fb_ref[...] += fb_part


@functools.partial(jax.jit, static_argnames=("combo_weights", "tile_rows"))
def _combo_loss_fn(x, y, class_w_row, combo_weights, tile_rows=None):
    n, c = x.shape
    assert c == class_w_row.shape[1], "class dimension mismatch"
    if n == 0:
        # PyTorch's mean over an empty batch is NaN; avoid 1/0 at trace time.
        return jnp.full((), jnp.nan, jnp.float32)

    # ---- lane packing: free (row-major) reshape (N, C) -> (N/pack, pack*C) --
    if n % 3 == 0:
        pack = 3
    elif n % 2 == 0:
        pack = 2
    else:
        pack = 1
    rows = n // pack
    width = pack * c
    xw = x.reshape(rows, width)
    yw = y.reshape(rows, width)

    # ---- tiling ---------------------------------------------------------
    if tile_rows is None:
        tile_rows = _MAX_TILE_ROWS
    tile_rows = max(8, min(int(tile_rows), _MAX_TILE_ROWS))
    if rows <= tile_rows:
        tile_rows = rows                       # single block == full array
    else:
        tile_rows = _round_up(tile_rows, 8)
    n_tiles = _cdiv(rows, tile_rows)
    splits = _N_SPLITS if n_tiles >= _N_SPLITS else 1
    tiles_per_split = _cdiv(n_tiles, splits)
    needs_mask = (rows % tile_rows != 0) or (splits * tiles_per_split != n_tiles)

    # ---- small resident operands ----------------------------------------
    w_row = jnp.tile(class_w_row.astype(jnp.float32), (1, pack))       # (1, W)
    seg = np.zeros((pack, width), np.float32)                          # segment masks
    for s in range(pack):
        seg[s, s * c:(s + 1) * c] = 1.0
    seg = jnp.asarray(seg)

    kernel = functools.partial(
        _combo_loss_kernel, pack=pack, tiles_per_split=tiles_per_split,
        total_rows=rows, needs_mask=needs_mask)

    if splits * tiles_per_split == n_tiles:
        def data_map(i, j):
            return (i * tiles_per_split + j, 0)
    else:                                   # clamp the single duplicate tile
        def data_map(i, j):
            return (jnp.minimum(i * tiles_per_split + j, n_tiles - 1), 0)

    part_shape = jax.ShapeDtypeStruct((splits, 1, 1), jnp.float32)
    part_spec = pl.BlockSpec((None, 1, 1), lambda i, j: (i, 0, 0))

    bce_p, wbce_p, fb_p = pl.pallas_call(
        kernel,
        out_shape=(part_shape, part_shape, part_shape),
        grid_spec=pltpu.PrefetchScalarGridSpec(
            num_scalar_prefetch=0,
            grid=(splits, tiles_per_split),
            in_specs=[
                pl.BlockSpec((tile_rows, width), data_map),        # logits tile
                pl.BlockSpec((tile_rows, width), data_map),        # targets tile
                pl.BlockSpec((1, width), lambda i, j: (0, 0)),     # class weights
                pl.BlockSpec((pack, width), lambda i, j: (0, 0)),  # segment masks
            ],
            out_specs=(part_spec, part_spec, part_spec),
        ),
        compiler_params=pltpu.CompilerParams(
            dimension_semantics=("parallel", "arbitrary"),
            vmem_limit_bytes=32 * 1024 * 1024),
    )(xw, yw, w_row, seg)

    # ---- tiny nonlinear finalize + weighted combine (still inside jit) ---
    bce_sum = jnp.sum(bce_p[:, 0, 0])
    wbce_sum = jnp.sum(wbce_p[:, 0, 0])
    fb_sum = jnp.sum(fb_p[:, 0, 0])

    inv_nc = 1.0 / float(n * c)
    inv_n = 1.0 / float(n)
    bce = bce_sum * inv_nc                  # BCEWithLogits(pos_weight=w), mean
    mlsml = wbce_sum * inv_nc               # MultiLabelSoftMargin(weight=w), mean
    logpt = -mlsml                          # Focal: mean of weighted -BCE
    pt = jnp.exp(logpt)
    focal = 0.75 * (-(1.0 - pt) * logpt)    # gamma=1, balance=0.75
    f1 = 1.0 - fb_sum * inv_n               # FBetaLoss(beta=1)

    w_bce, w_mlsml, w_focal, w_f1 = combo_weights
    return w_bce * bce + w_mlsml * mlsml + w_focal * focal + w_f1 * f1


def _reference_combo_loss(x, y, class_w_row, combo_weights):
    """Pure-JAX reference of the PyTorch ComboLoss forward (for validation)."""
    x = jnp.asarray(x, jnp.float32)
    y = jnp.asarray(y, jnp.float32)
    w = class_w_row.astype(jnp.float32)
    eps = 1e-8
    sp_pos = jax.nn.softplus(x)
    sp_neg = jax.nn.softplus(-x)
    bce_elem = y * sp_neg + (1.0 - y) * sp_pos
    bce = jnp.mean(w * y * sp_neg + (1.0 - y) * sp_pos)
    mlsml = jnp.mean(jnp.sum(w * bce_elem, axis=1) / x.shape[1])
    logpt = -jnp.mean(w * bce_elem)
    pt = jnp.exp(logpt)
    focal = 0.75 * (-(1.0 - pt) * logpt)
    p = jax.nn.sigmoid(x)
    tp = jnp.sum(p * y, axis=1)
    prec = tp / (jnp.sum(p, axis=1) + eps)
    rec = tp / (jnp.sum(y, axis=1) + eps)
    f1 = 1.0 - jnp.mean(2.0 * prec * rec / (prec + rec + eps))
    cw = combo_weights
    return cw[0] * bce + cw[1] * mlsml + cw[2] * focal + cw[3] * f1


class ComboLoss:
    """JAX/Pallas re-implementation of the PyTorch ComboLoss forward pass."""

    _IDX = {"bce": 0, "mlsml": 1, "focal": 2, "f1": 3}

    def __init__(self, losses, weights):
        assert len(losses) == len(weights), "losses and weights should have same length"
        cw = [0.0, 0.0, 0.0, 0.0]
        for loss, weight in zip(losses, weights):
            if loss in self._IDX:
                cw[self._IDX[loss]] += float(weight)
        self.combo_weights = tuple(cw)     # static -> folded into the jit
        self.class_weights = jnp.asarray(CLASSES_WEIGHTS, jnp.float32).reshape(1, NUM_CLASSES)

    def __call__(self, inputs, targets, tile_rows=None):
        return _combo_loss_fn(inputs, targets, self.class_weights,
                              self.combo_weights, tile_rows=tile_rows)


if __name__ == "__main__":
    key = jax.random.PRNGKey(0)
    combo = ComboLoss(losses=["bce", "mlsml", "focal", "f1"],
                      weights=[1.0, 0.5, 0.25, 0.25])

    def _check(out, ref):
        assert out.shape == ()
        assert bool(jnp.isfinite(out))
        assert abs(float(out) - float(ref)) <= 1e-3 * max(1.0, abs(float(ref)))

    # (batch, dtype, tile_rows override) -- exercises pack=3 / pack=2 / pack=1,
    # the in-kernel tail mask, the 2-way split with a clamped duplicate tile,
    # and bf16 inputs.
    cases = [
        (8,  jnp.float32, None),   # pack=2, single full-array block
        (9,  jnp.float32, None),   # pack=3
        (13, jnp.float32, None),   # pack=1 fallback
        (1,  jnp.float32, None),   # single sample
        (26, jnp.float32, 8),      # pack=2, rows=13, tile=8 -> partial tail tile (mask path)
        (72, jnp.float32, 8),      # pack=3, rows=24, 3 tiles -> 2-way split + clamped tile
        (8,  jnp.bfloat16, None),  # bf16 inputs (kernel upcasts internally)
    ]
    for batch, dt, tile in cases:
        key, k_x, k_y = jax.random.split(key, 3)
        x = (jax.random.normal(k_x, (batch, NUM_CLASSES), dtype=jnp.float32) * 2.0).astype(dt)
        y = jax.random.bernoulli(k_y, p=0.3, shape=(batch, NUM_CLASSES)).astype(dt)
        out = jax.block_until_ready(combo(x, y, tile_rows=tile))
        ref = _reference_combo_loss(x, y, combo.class_weights, combo.combo_weights)
        _check(out, ref)

    print("KERNEL_OK")
</pallas_src>

<mosaic_0001>
module attributes {stable_mosaic.version = 11 : i64} {
  func.func @_combo_loss_kernel(%arg0: i32, %arg1: i32, %arg2: memref<4x68xf32, #tpu.memory_space<vmem>>, %arg3: memref<4x68xf32, #tpu.memory_space<vmem>>, %arg4: memref<1x68xf32, #tpu.memory_space<vmem>>, %arg5: memref<2x68xf32, #tpu.memory_space<vmem>>, %arg6: memref<1x1x1xf32, #tpu.memory_space<vmem>>, %arg7: memref<1x1x1xf32, #tpu.memory_space<vmem>>, %arg8: memref<1x1x1xf32, #tpu.memory_space<vmem>>) attributes {dimension_semantics = [#tpu.dimension_semantics<parallel>, #tpu.dimension_semantics<arbitrary>], iteration_bounds = array<i64: 1, 1>, scalar_prefetch = 0 : i64, scratch_operands = 0 : i64, tpu.core_type = #tpu.core_type<tc>, window_params = [{transform_indices = @transform_0, window_bounds = array<i64: 4, 68>}, {transform_indices = @transform_1, window_bounds = array<i64: 4, 68>}, {pipeline_mode = #tpu.pipeline_mode<synchronous>, transform_indices = @transform_2, window_bounds = array<i64: 1, 68>}, {pipeline_mode = #tpu.pipeline_mode<synchronous>, transform_indices = @transform_3, window_bounds = array<i64: 2, 68>}, {transform_indices = @transform_4, window_bounds = array<i64: 1, 1, 1>}, {transform_indices = @transform_5, window_bounds = array<i64: 1, 1, 1>}, {transform_indices = @transform_6, window_bounds = array<i64: 1, 1, 1>}]} {
    %c0_i32 = arith.constant 0 : i32
    %0 = arith.cmpi eq, %arg1, %c0_i32 : i32
    %1 = arith.extui %0 : i1 to i32
    %c0_i32_0 = arith.constant 0 : i32
    %2 = arith.cmpi ne, %1, %c0_i32_0 : i32
    scf.if %2 {
      %cst_47 = arith.constant 0.000000e+00 : f32
      %113 = vector.broadcast %cst_47 : f32 to vector<1x1xf32>
      %c0_48 = arith.constant 0 : index
      %c0_49 = arith.constant 0 : index
      %c0_50 = arith.constant 0 : index
      %114 = vector.load %arg6[%c0_48, %c0_49, %c0_50] : memref<1x1x1xf32, #tpu.memory_space<vmem>>, vector<1x1x1xf32>
      %115 = vector.shape_cast %114 : vector<1x1x1xf32> to vector<1x1xf32>
      %116 = vector.shape_cast %113 : vector<1x1xf32> to vector<1x1x1xf32>
      tpu.vector_store %arg6[%c0_48, %c0_49, %c0_50], %116 {strides = array<i32>} : memref<1x1x1xf32, #tpu.memory_space<vmem>>, vector<1x1x1xf32>,
      %cst_51 = arith.constant 0.000000e+00 : f32
      %117 = vector.broadcast %cst_51 : f32 to vector<1x1xf32>
      %c0_52 = arith.constant 0 : index
      %c0_53 = arith.constant 0 : index
      %c0_54 = arith.constant 0 : index
      %118 = vector.load %arg7[%c0_52, %c0_53, %c0_54] : memref<1x1x1xf32, #tpu.memory_space<vmem>>, vector<1x1x1xf32>
      %119 = vector.shape_cast %118 : vector<1x1x1xf32> to vector<1x1xf32>
      %120 = vector.shape_cast %117 : vector<1x1xf32> to vector<1x1x1xf32>
      tpu.vector_store %arg7[%c0_52, %c0_53, %c0_54], %120 {strides = array<i32>} : memref<1x1x1xf32, #tpu.memory_space<vmem>>, vector<1x1x1xf32>,
      %cst_55 = arith.constant 0.000000e+00 : f32
      %121 = vector.broadcast %cst_55 : f32 to vector<1x1xf32>
      %c0_56 = arith.constant 0 : index
      %c0_57 = arith.constant 0 : index
      %c0_58 = arith.constant 0 : index
      %122 = vector.load %arg8[%c0_56, %c0_57, %c0_58] : memref<1x1x1xf32, #tpu.memory_space<vmem>>, vector<1x1x1xf32>
      %123 = vector.shape_cast %122 : vector<1x1x1xf32> to vector<1x1xf32>
      %124 = vector.shape_cast %121 : vector<1x1xf32> to vector<1x1x1xf32>
      tpu.vector_store %arg8[%c0_56, %c0_57, %c0_58], %124 {strides = array<i32>} : memref<1x1x1xf32, #tpu.memory_space<vmem>>, vector<1x1x1xf32>,
    } else {
    }
    %c0 = arith.constant 0 : index
    %c0_1 = arith.constant 0 : index
    %3 = vector.load %arg2[%c0, %c0_1] : memref<4x68xf32, #tpu.memory_space<vmem>>, vector<4x68xf32>
    %c0_2 = arith.constant 0 : index
    %c0_3 = arith.constant 0 : index
    %4 = vector.load %arg3[%c0_2, %c0_3] : memref<4x68xf32, #tpu.memory_space<vmem>>, vector<4x68xf32>
    %c0_4 = arith.constant 0 : index
    %c0_5 = arith.constant 0 : index
    %5 = vector.load %arg4[%c0_4, %c0_5] : memref<1x68xf32, #tpu.memory_space<vmem>>, vector<1x68xf32>
    %6 = math.absf %3 : vector<4x68xf32>
    %cst = arith.constant 0.000000e+00 : f32
    %7 = vector.broadcast %cst : f32 to vector<4x68xf32>
    %8 = arith.subf %7, %6 : vector<4x68xf32>
    %9 = math.exp %8 : vector<4x68xf32>
    %cst_6 = arith.constant 0.000000e+00 : f32
    %10 = vector.broadcast %cst_6 : f32 to vector<4x68xf32>
    %11 = arith.maximumf %3, %10 : vector<4x68xf32>
    %12 = math.log1p %9 : vector<4x68xf32>
    %13 = arith.addf %11, %12 : vector<4x68xf32>
    %14 = arith.subf %13, %3 : vector<4x68xf32>
    %15 = arith.mulf %4, %14 : vector<4x68xf32>
    %cst_7 = arith.constant 1.000000e+00 : f32
    %16 = vector.broadcast %cst_7 : f32 to vector<4x68xf32>
    %17 = arith.subf %16, %4 : vector<4x68xf32>
    %18 = arith.mulf %17, %13 : vector<4x68xf32>
    %19 = vector.broadcast %5 : vector<1x68xf32> to vector<4x68xf32>
    %20 = arith.mulf %19, %15 : vector<4x68xf32>
    %21 = vector.broadcast %5 : vector<1x68xf32> to vector<4x68xf32>
    %22 = arith.mulf %21, %18 : vector<4x68xf32>
    %c0_8 = arith.constant 0 : index
    %c0_9 = arith.constant 0 : index
    %c0_10 = arith.constant 0 : index
    %23 = vector.load %arg6[%c0_8, %c0_9, %c0_10] : memref<1x1x1xf32, #tpu.memory_space<vmem>>, vector<1x1x1xf32>
    %24 = vector.shape_cast %23 : vector<1x1x1xf32> to vector<1x1xf32>
    %25 = arith.addf %20, %18 : vector<4x68xf32>
    %26 = vector.shape_cast %25 : vector<4x68xf32> to vector<1x4x68xf32>
    %cst_11 = arith.constant dense<0.000000e+00> : vector<1xf32>
    %27 = vector.multi_reduction <add>, %26, %cst_11 [1, 2] : vector<1x4x68xf32> to vector<1xf32>
    %28 = vector.shape_cast %27 : vector<1xf32> to vector<1x1x1xf32>
    %29 = vector.extract %28[0, 0, 0] : f32 from vector<1x1x1xf32>
    %30 = vector.broadcast %29 : f32 to vector<1x1xf32>
    %31 = arith.addf %24, %30 : vector<1x1xf32>
    %c0_12 = arith.constant 0 : index
    %c0_13 = arith.constant 0 : index
    %c0_14 = arith.constant 0 : index
    %32 = vector.load %arg6[%c0_12, %c0_13, %c0_14] : memref<1x1x1xf32, #tpu.memory_space<vmem>>, vector<1x1x1xf32>
    %33 = vector.shape_cast %32 : vector<1x1x1xf32> to vector<1x1xf32>
    %34 = vector.shape_cast %31 : vector<1x1xf32> to vector<1x1x1xf32>
    tpu.vector_store %arg6[%c0_12, %c0_13, %c0_14], %34 {strides = array<i32>} : memref<1x1x1xf32, #tpu.memory_space<vmem>>, vector<1x1x1xf32>,
    %c0_15 = arith.constant 0 : index
    %c0_16 = arith.constant 0 : index
    %c0_17 = arith.constant 0 : index
    %35 = vector.load %arg7[%c0_15, %c0_16, %c0_17] : memref<1x1x1xf32, #tpu.memory_space<vmem>>, vector<1x1x1xf32>
    %36 = vector.shape_cast %35 : vector<1x1x1xf32> to vector<1x1xf32>
    %37 = arith.addf %20, %22 : vector<4x68xf32>
    %38 = vector.shape_cast %37 : vector<4x68xf32> to vector<1x4x68xf32>
    %cst_18 = arith.constant dense<0.000000e+00> : vector<1xf32>
    %39 = vector.multi_reduction <add>, %38, %cst_18 [1, 2] : vector<1x4x68xf32> to vector<1xf32>
    %40 = vector.shape_cast %39 : vector<1xf32> to vector<1x1x1xf32>
    %41 = vector.extract %40[0, 0, 0] : f32 from vector<1x1x1xf32>
    %42 = vector.broadcast %41 : f32 to vector<1x1xf32>
    %43 = arith.addf %36, %42 : vector<1x1xf32>
    %c0_19 = arith.constant 0 : index
    %c0_20 = arith.constant 0 : index
    %c0_21 = arith.constant 0 : index
    %44 = vector.load %arg7[%c0_19, %c0_20, %c0_21] : memref<1x1x1xf32, #tpu.memory_space<vmem>>, vector<1x1x1xf32>
    %45 = vector.shape_cast %44 : vector<1x1x1xf32> to vector<1x1xf32>
    %46 = vector.shape_cast %43 : vector<1x1xf32> to vector<1x1x1xf32>
    tpu.vector_store %arg7[%c0_19, %c0_20, %c0_21], %46 {strides = array<i32>} : memref<1x1x1xf32, #tpu.memory_space<vmem>>, vector<1x1x1xf32>,
    %cst_22 = arith.constant 0.000000e+00 : f32
    %47 = vector.broadcast %cst_22 : f32 to vector<4x68xf32>
    %48 = arith.cmpf oge, %3, %47 : vector<4x68xf32>
    %cst_23 = arith.constant 1.000000e+00 : f32
    %49 = vector.broadcast %cst_23 : f32 to vector<4x68xf32>
    %50 = arith.select %48, %49, %9 : vector<4x68xi1>, vector<4x68xf32>
    %cst_24 = arith.constant 1.000000e+00 : f32
    %51 = vector.broadcast %cst_24 : f32 to vector<4x68xf32>
    %52 = arith.addf %51, %9 : vector<4x68xf32>
    %53 = tpu.reciprocal %52 {approx = true} : vector<4x68xf32> -> vector<4x68xf32>
    %54 = arith.mulf %50, %53 : vector<4x68xf32>
    %55 = arith.mulf %54, %4 : vector<4x68xf32>
    %cst_25 = arith.constant 0.000000e+00 : f32
    %56 = vector.broadcast %cst_25 : f32 to vector<1x1xf32>
    %c0_26 = arith.constant 0 : index
    %c0_27 = arith.constant 0 : index
    %57 = vector.load %arg5[%c0_26, %c0_27] : memref<2x68xf32, #tpu.memory_space<vmem>>, vector<1x68xf32>
    %58 = vector.broadcast %57 : vector<1x68xf32> to vector<4x68xf32>
    %59 = arith.mulf %55, %58 : vector<4x68xf32>
    %cst_28 = arith.constant dense<0.000000e+00> : vector<4xf32>
    %60 = vector.multi_reduction <add>, %59, %cst_28 [1] : vector<4x68xf32> to vector<4xf32>
    %61 = vector.shape_cast %60 : vector<4xf32> to vector<4x1xf32>
    %62 = vector.broadcast %57 : vector<1x68xf32> to vector<4x68xf32>
    %63 = arith.mulf %54, %62 : vector<4x68xf32>
    %cst_29 = arith.constant dense<0.000000e+00> : vector<4xf32>
    %64 = vector.multi_reduction <add>, %63, %cst_29 [1] : vector<4x68xf32> to vector<4xf32>
    %65 = vector.shape_cast %64 : vector<4xf32> to vector<4x1xf32>
    %66 = vector.broadcast %57 : vector<1x68xf32> to vector<4x68xf32>
    %67 = arith.mulf %4, %66 : vector<4x68xf32>
    %cst_30 = arith.constant dense<0.000000e+00> : vector<4xf32>
    %68 = vector.multi_reduction <add>, %67, %cst_30 [1] : vector<4x68xf32> to vector<4xf32>
    %69 = vector.shape_cast %68 : vector<4xf32> to vector<4x1xf32>
    %cst_31 = arith.constant 2.000000e+00 : f32
    %70 = vector.broadcast %cst_31 : f32 to vector<4x1xf32>
    %71 = arith.mulf %70, %61 : vector<4x1xf32>
    %72 = arith.addf %65, %69 : vector<4x1xf32>
    %cst_32 = arith.constant 9.99999993E-9 : f32
    %73 = vector.broadcast %cst_32 : f32 to vector<4x1xf32>
    %74 = arith.addf %72, %73 : vector<4x1xf32>
    %75 = arith.divf %71, %74 : vector<4x1xf32>
    %76 = vector.shape_cast %75 : vector<4x1xf32> to vector<1x4x1xf32>
    %cst_33 = arith.constant dense<0.000000e+00> : vector<1xf32>
    %77 = vector.multi_reduction <add>, %76, %cst_33 [1, 2] : vector<1x4x1xf32> to vector<1xf32>
    %78 = vector.shape_cast %77 : vector<1xf32> to vector<1x1x1xf32>
    %79 = vector.extract %78[0, 0, 0] : f32 from vector<1x1x1xf32>
    %80 = vector.broadcast %79 : f32 to vector<1x1xf32>
    %81 = arith.addf %56, %80 : vector<1x1xf32>
    %c1 = arith.constant 1 : index
    %c0_34 = arith.constant 0 : index
    %82 = vector.load %arg5[%c1, %c0_34] : memref<2x68xf32, #tpu.memory_space<vmem>>, vector<1x68xf32>
    %83 = vector.broadcast %82 : vector<1x68xf32> to vector<4x68xf32>
    %84 = arith.mulf %55, %83 : vector<4x68xf32>
    %cst_35 = arith.constant dense<0.000000e+00> : vector<4xf32>
    %85 = vector.multi_reduction <add>, %84, %cst_35 [1] : vector<4x68xf32> to vector<4xf32>
    %86 = vector.shape_cast %85 : vector<4xf32> to vector<4x1xf32>
    %87 = vector.broadcast %82 : vector<1x68xf32> to vector<4x68xf32>
    %88 = arith.mulf %54, %87 : vector<4x68xf32>
    %cst_36 = arith.constant dense<0.000000e+00> : vector<4xf32>
    %89 = vector.multi_reduction <add>, %88, %cst_36 [1] : vector<4x68xf32> to vector<4xf32>
    %90 = vector.shape_cast %89 : vector<4xf32> to vector<4x1xf32>
    %91 = vector.broadcast %82 : vector<1x68xf32> to vector<4x68xf32>
    %92 = arith.mulf %4, %91 : vector<4x68xf32>
    %cst_37 = arith.constant dense<0.000000e+00> : vector<4xf32>
    %93 = vector.multi_reduction <add>, %92, %cst_37 [1] : vector<4x68xf32> to vector<4xf32>
    %94 = vector.shape_cast %93 : vector<4xf32> to vector<4x1xf32>
    %cst_38 = arith.constant 2.000000e+00 : f32
    %95 = vector.broadcast %cst_38 : f32 to vector<4x1xf32>
    %96 = arith.mulf %95, %86 : vector<4x1xf32>
    %97 = arith.addf %90, %94 : vector<4x1xf32>
    %cst_39 = arith.constant 9.99999993E-9 : f32
    %98 = vector.broadcast %cst_39 : f32 to vector<4x1xf32>
    %99 = arith.addf %97, %98 : vector<4x1xf32>
    %100 = arith.divf %96, %99 : vector<4x1xf32>
    %101 = vector.shape_cast %100 : vector<4x1xf32> to vector<1x4x1xf32>
    %cst_40 = arith.constant dense<0.000000e+00> : vector<1xf32>
    %102 = vector.multi_reduction <add>, %101, %cst_40 [1, 2] : vector<1x4x1xf32> to vector<1xf32>
    %103 = vector.shape_cast %102 : vector<1xf32> to vector<1x1x1xf32>
    %104 = vector.extract %103[0, 0, 0] : f32 from vector<1x1x1xf32>
    %105 = vector.broadcast %104 : f32 to vector<1x1xf32>
    %106 = arith.addf %81, %105 : vector<1x1xf32>
    %c0_41 = arith.constant 0 : index
    %c0_42 = arith.constant 0 : index
    %c0_43 = arith.constant 0 : index
    %107 = vector.load %arg8[%c0_41, %c0_42, %c0_43] : memref<1x1x1xf32, #tpu.memory_space<vmem>>, vector<1x1x1xf32>
    %108 = vector.shape_cast %107 : vector<1x1x1xf32> to vector<1x1xf32>
    %109 = arith.addf %108, %106 : vector<1x1xf32>
    %c0_44 = arith.constant 0 : index
    %c0_45 = arith.constant 0 : index
    %c0_46 = arith.constant 0 : index
    %110 = vector.load %arg8[%c0_44, %c0_45, %c0_46] : memref<1x1x1xf32, #tpu.memory_space<vmem>>, vector<1x1x1xf32>
    %111 = vector.shape_cast %110 : vector<1x1x1xf32> to vector<1x1xf32>
    %112 = vector.shape_cast %109 : vector<1x1xf32> to vector<1x1x1xf32>
    tpu.vector_store %arg8[%c0_44, %c0_45, %c0_46], %112 {strides = array<i32>} : memref<1x1x1xf32, #tpu.memory_space<vmem>>, vector<1x1x1xf32>,
    return
  }
  func.func @transform_0(%arg0: i32, %arg1: i32) -> (i32, i32) {
    %c1_i32 = arith.constant 1 : i32
    %0 = arith.muli %arg0, %c1_i32 : i32
    %1 = arith.addi %0, %arg1 : i32
    %c0_i32 = arith.constant 0 : i32
    %c0_i32_0 = arith.constant 0 : i32
    return %1, %c0_i32 : i32, i32
  }
  func.func @transform_1(%arg0: i32, %arg1: i32) -> (i32, i32) {
    %c1_i32 = arith.constant 1 : i32
    %0 = arith.muli %arg0, %c1_i32 : i32
    %1 = arith.addi %0, %arg1 : i32
    %c0_i32 = arith.constant 0 : i32
    %c0_i32_0 = arith.constant 0 : i32
    return %1, %c0_i32 : i32, i32
  }
  func.func @transform_2(%arg0: i32, %arg1: i32) -> (i32, i32) {
    %c0_i32 = arith.constant 0 : i32
    %c0_i32_0 = arith.constant 0 : i32
    %c0_i32_1 = arith.constant 0 : i32
    return %c0_i32, %c0_i32_0 : i32, i32
  }
  func.func @transform_3(%arg0: i32, %arg1: i32) -> (i32, i32) {
    %c0_i32 = arith.constant 0 : i32
    %c0_i32_0 = arith.constant 0 : i32
    %c0_i32_1 = arith.constant 0 : i32
    return %c0_i32, %c0_i32_0 : i32, i32
  }
  func.func @transform_4(%arg0: i32, %arg1: i32) -> (i32, i32, i32) {
    %c0_i32 = arith.constant 0 : i32
    %c0_i32_0 = arith.constant 0 : i32
    %c0_i32_1 = arith.constant 0 : i32
    return %arg0, %c0_i32, %c0_i32_0 : i32, i32, i32
  }
  func.func @transform_5(%arg0: i32, %arg1: i32) -> (i32, i32, i32) {
    %c0_i32 = arith.constant 0 : i32
    %c0_i32_0 = arith.constant 0 : i32
    %c0_i32_1 = arith.constant 0 : i32
    return %arg0, %c0_i32, %c0_i32_0 : i32, i32, i32
  }
  func.func @transform_6(%arg0: i32, %arg1: i32) -> (i32, i32, i32) {
    %c0_i32 = arith.constant 0 : i32
    %c0_i32_0 = arith.constant 0 : i32
    %c0_i32_1 = arith.constant 0 : i32
    return %arg0, %c0_i32, %c0_i32_0 : i32, i32, i32
  }
}

</mosaic_0001>

<llo_original>
// kernel: _combo_loss_fn.1
$region0: #{_combo_loss_fn.1}
  #allocation0 [shape = 'u32[]', space=smem, size = 0x4, offset = 0x4, fixed_abs, tag = 'smem constant byte address 0x4 - core index']
  #allocation1 [shape = 'u32[144,128]{1,0:T(1,128)}', space=vmem, size = 0x12000, scoped, tag = 'internal scratch']
  %s0 = inlined_call_operand.vmem [shape: f32[4,68], index: 0, kind: input, shape index: {}]
  %s1 = inlined_call_operand.vmem [shape: f32[4,68], index: 1, kind: input, shape index: {}]
  %s2 = inlined_call_operand.vmem [shape: f32[1,68], index: 2, kind: input, shape index: {}]
  %s3 = inlined_call_operand.vmem [shape: f32[2,68], index: 3, kind: input, shape index: {}]
  %s4 = inlined_call_operand.hbm [shape: f32[1,1,1], index: 4, kind: output, shape index: {0}]
  %s5 = inlined_call_operand.hbm [shape: f32[1,1,1], index: 5, kind: output, shape index: {1}]
  %s6 = inlined_call_operand.hbm [shape: f32[1,1,1], index: 6, kind: output, shape index: {2}]
  %7 = xla_tuple %s4, %s5, %s6
  %s8 = sld [smem:[#allocation0]]
  $region46: #{_combo_loss_fn.1} parent=0
    _
  %s10 = ssub.s32 1, %s8
  %s11 = scalar_select 0, %s10, %s8
  $region1: #{_combo_loss_fn.1} parent=0
    #allocation2 [shape = 'u8[512]{0}', space=vmem, size = 0x400, scoped, tag = 'output window, operand 0, single buffered']
    #allocation3 [shape = 's32[1]{0}', space=sflag, size = 0x4, scoped, tag = 'scoped memory for _combo_loss_fn.1']
    #allocation4 [shape = 'u8[512]{0}', space=vmem, size = 0x400, scoped, tag = 'output window, operand 1, single buffered']
    #allocation5 [shape = 's32[1]{0}', space=sflag, size = 0x4, scoped, tag = 'scoped memory for _combo_loss_fn.1']
    #allocation6 [shape = 'u8[512]{0}', space=vmem, size = 0x400, scoped, tag = 'output window, operand 2, single buffered']
    %12 = vsyncpa [#allocation3], 0
    %13 = vsyncpa [#allocation5], 0
    // Predicated region
    $region2: #{_combo_loss_fn.1} parent=1 // pred_check
      _
    $region3: #{_combo_loss_fn.1} parent=1 // pred_check_branch
      %15 = sbr.rel (0) target = $region5
    $region4: #{_combo_loss_fn.1} parent=1 // pred_region
      %s16 = sadd.s32 0, 0
      %p17 = scmp.lt.s32.totalorder %s16, 0
      %s18 = scalar_select %p17, %s16, 0
      %s19 = smul.addr %s18, 4
      %s20 = scalar_lea.vmem %s0, %s19
      %s21 = sadd.s32 0, 0
    $region5: #{_combo_loss_fn.1} parent=1 // pred_fallthru
      _
    // Predicated region
    $region6: #{_combo_loss_fn.1} parent=1 // pred_check
      _
    $region7: #{_combo_loss_fn.1} parent=1 // pred_check_branch
      %23 = sbr.rel (0) target = $region9
    $region8: #{_combo_loss_fn.1} parent=1 // pred_region
      %s24 = sadd.s32 0, 0
      %p25 = scmp.lt.s32.totalorder %s24, 0
      %s26 = scalar_select %p25, %s24, 0
      %s27 = smul.addr %s26, 4
      %s28 = scalar_lea.vmem %s1, %s27
      %s29 = sadd.s32 0, 0
    $region9: #{_combo_loss_fn.1} parent=1 // pred_fallthru
      _
    // Predicated region
    $region10: #{_combo_loss_fn.1} parent=1 // pred_check
      _
    $region11: #{_combo_loss_fn.1} parent=1 // pred_check_branch
      %31 = sbr.rel (0) target = $region13
    $region12: #{_combo_loss_fn.1} parent=1 // pred_region
      _
    $region13: #{_combo_loss_fn.1} parent=1 // pred_fallthru
      _
    // Predicated region
    $region14: #{_combo_loss_fn.1} parent=1 // pred_check
      _
    $region15: #{_combo_loss_fn.1} parent=1 // pred_check_branch
      %33 = sbr.rel (0) target = $region17
    $region16: #{_combo_loss_fn.1} parent=1 // pred_region
      _
    $region17: #{_combo_loss_fn.1} parent=1 // pred_fallthru
      _
    %s34 = sadd.s32 0, 0
    %p35 = scmp.lt.s32.totalorder %s34, 0
    %s36 = scalar_select %p35, %s34, 0
    %s37 = smul.addr %s36, 4
    %s38 = scalar_lea.vmem %s0, %s37
    %s39 = sadd.s32 0, 0
    %p40 = scmp.lt.s32.totalorder %s39, 0
    %s41 = scalar_select %p40, %s39, 0
    %s42 = smul.addr %s41, 4
    %s43 = scalar_lea.vmem %s1, %s42
    %s44 = sadd.s32 0, 0
    %p45 = scmp.lt.s32.totalorder %s44, 0
    %s46 = scalar_select %p45, %s44, 0
    %s47 = smul.addr %s46, 4
    %s48 = scalar_lea.vmem %s0, %s47
    %s49 = sadd.s32 0, 0
    %s50 = sadd.s32 0, 0
    %p51 = scmp.lt.s32.totalorder %s50, 0
    %s52 = scalar_select %p51, %s50, 0
    %s53 = smul.addr %s52, 4
    %s54 = scalar_lea.vmem %s1, %s53
    %s55 = sadd.s32 0, 0
    %p56 = scmp.eq.s32.totalorder 0, 0
    // Predicated region
    $region18: #{_combo_loss_fn.1} parent=1 // pred_check
      %p57 = pneg %p56
    $region19: #{_combo_loss_fn.1} parent=1 // pred_check_branch
      %59 = sbr.rel (%p57) target = $region21
    $region20: #{_combo_loss_fn.1} parent=1 // pred_region
      %vm60 = vcmask 0
      %61 = vst.msk [vmem:[#allocation2] sm:$0x1] %vm60, 0.0
      %62 = vst.msk [vmem:[#allocation4] sm:$0x1] %vm60, 0.0
      %63 = vst.msk [vmem:[#allocation6] sm:$0x1] %vm60, 0.0
    $region21: #{_combo_loss_fn.1} parent=1 // pred_fallthru
      _
    %v64 = vld [vmem:[%s48] sm:$0xf]
    %v65 = vld [vmem:[%s54] sm:$0xf]
    %v66 = vld [vmem:[%s2] sm:$0x1]
    %v67 = vand.u32 2147483647, %v64
    %v68 = vsub.f32 0.0, %v67
    %v69 = vmul.f32 %v68, 1.442695
    %v70 = vpow.pop %v69
    %v71 = vmax.f32 %v64, 0.0
    %v72 = vadd.f32 %v70, 1.0
    %v73 = vlog2.pop %v72
    %v74 = vmul.f32 %v73, 0.6931472
    %v75 = vmul.f32 -0.5, %v70
    %v76 = vadd.f32 %v75, 1.0
    %v77 = vmul.f32 %v76, %v70
    %v78 = vand.u32 2147483647, %v70
    %vm79 = vcmp.lt.f32.partialorder %v78, 0.0004427343
    %v80 = vsel %vm79, %v77, %v74
    %v81 = vadd.f32 %v71, %v80
    %v82 = vsub.f32 %v81, %v64
    %v83 = vmul.f32 %v65, %v82
    %v84 = vsub.f32 1.0, %v65
    %v85 = vmul.f32 %v84, %v81
    %v87 = vlaneseq
    %v88 = vshrl.u32 %v87, 7
    %v89 = vsub.s32 0, %v88
    %v90 = vrot.slane %v66, %v89
    %v92 = vmul.f32 %v90, %v83
    %v93 = vmul.f32 %v90, %v85
    %v94 = vld [vmem:[#allocation2] sm:$0x1]
    %v95 = vadd.f32 %v92, %v85
    %vm96 = vcmask 551936
    %v97 = vsel %vm96, %v95, 0.0
    %98 = vadd.xlane.f32.xlu0 %v97
    %v99 = vpop.xlane.xlu0 %98
    %v100 = vrot.slane %v99, 4
    %v101 = vadd.f32 %v99, %v100
    %v102 = vrot.slane %v101, 2
    %v103 = vadd.f32 %v101, %v102
    %v104 = vrot.slane %v103, 1
    %v105 = vadd.f32 %v103, %v104
    %s106 = vtos %v105
    %v107 = vstv %s106
    %v108 = vadd.f32 %v94, %v107
    %vm109 = vcmask 0
    %110 = vst.msk [vmem:[#allocation2] sm:$0x1] %vm109, %v108
    %v111 = vld [vmem:[#allocation4] sm:$0x1]
    %v112 = vadd.f32 %v92, %v93
    %v113 = vsel %vm96, %v112, 0.0
    %114 = vadd.xlane.f32.xlu0 %v113
    %v115 = vpop.xlane.xlu0 %114
    %v116 = vrot.slane %v115, 4
    %v117 = vadd.f32 %v115, %v116
    %v118 = vrot.slane %v117, 2
    %v119 = vadd.f32 %v117, %v118
    %v120 = vrot.slane %v119, 1
    %v121 = vadd.f32 %v119, %v120
    %s122 = vtos %v121
    %v123 = vstv %s122
    %v124 = vadd.f32 %v111, %v123
    %125 = vst.msk [vmem:[#allocation4] sm:$0x1] %vm109, %v124
    %vm126 = vcmp.ge.f32.partialorder %v64, 0.0
    %v127 = vsel %vm126, 1.0, %v70
    %v128 = vadd.f32 %v70, 1.0
    %v129 = vrcp.pop %v128
    %v130 = vmul.f32 %v127, %v129
    %v131 = vmul.f32 %v130, %v65
    %v132 = vld [vmem:[%s3] sm:$0x1]
    %v133 = vlaneseq
    %v134 = vshrl.u32 %v133, 7
    %v135 = vsub.s32 0, %v134
    %v136 = vrot.slane %v132, %v135
    %v137 = vmul.f32 %v131, %v136
    %v138 = vsel %vm96, %v137, 0.0
    %139 = vadd.xlane.f32.xlu0 %v138
    %v140 = vpop.xlane.xlu0 %139
    %v141 = vmul.f32 %v130, %v136
    %v142 = vsel %vm96, %v141, 0.0
    %143 = vadd.xlane.f32.xlu0 %v142
    %v144 = vpop.xlane.xlu0 %143
    %v145 = vmul.f32 %v65, %v136
    %v146 = vsel %vm96, %v145, 0.0
    %147 = vadd.xlane.f32.xlu0 %v146
    %v148 = vpop.xlane.xlu0 %147
    %v149 = vmul.f32 %v140, 2.0
    %v150 = vadd.f32 %v144, %v148
    %v151 = vadd.f32 %v150, 1e-08
    %v152 = vrcp.pop %v151
    %v153 = vmul.f32 %v149, %v152
    %vm154 = vcmask 3072
    %v155 = vsel %vm154, %v153, 0.0
    %156 = vadd.xlane.f32.xlu0 %v155
    %v157 = vpop.xlane.xlu0 %156
    %v158 = vrot.slane %v157, 4
    %v159 = vadd.f32 %v157, %v158
    %v160 = vrot.slane %v159, 2
    %v161 = vadd.f32 %v159, %v160
    %v162 = vrot.slane %v161, 1
    %v163 = vadd.f32 %v161, %v162
    %s164 = vtos %v163
    %v165 = vstv %s164
    %v166 = vadd.f32 %v165, 0.0
    %v167 = vld [vmem:[%s3 + $0x1] sm:$0x1]
    %v168 = vlaneseq
    %v169 = vshrl.u32 %v168, 7
    %v170 = vsub.s32 0, %v169
    %v171 = vrot.slane %v167, %v170
    %v172 = vmul.f32 %v131, %v171
    %v173 = vsel %vm96, %v172, 0.0
    %174 = vadd.xlane.f32.xlu0 %v173
    %v175 = vpop.xlane.xlu0 %174
    %v176 = vmul.f32 %v130, %v171
    %v177 = vsel %vm96, %v176, 0.0
    %178 = vadd.xlane.f32.xlu0 %v177
    %v179 = vpop.xlane.xlu0 %178
    %v180 = vmul.f32 %v65, %v171
    %v181 = vsel %vm96, %v180, 0.0
    %182 = vadd.xlane.f32.xlu0 %v181
    %v183 = vpop.xlane.xlu0 %182
    %v184 = vmul.f32 %v175, 2.0
    %v185 = vadd.f32 %v179, %v183
    %v186 = vadd.f32 %v185, 1e-08
    %v187 = vrcp.pop %v186
    %v188 = vmul.f32 %v184, %v187
    %v189 = vsel %vm154, %v188, 0.0
    %190 = vadd.xlane.f32.xlu0 %v189
    %v191 = vpop.xlane.xlu0 %190
    %v192 = vrot.slane %v191, 4
    %v193 = vadd.f32 %v191, %v192
    %v194 = vrot.slane %v193, 2
    %v195 = vadd.f32 %v193, %v194
    %v196 = vrot.slane %v195, 1
    %v197 = vadd.f32 %v195, %v196
    %s198 = vtos %v197
    %v199 = vstv %s198
    %v200 = vadd.f32 %v166, %v199
    %v201 = vld [vmem:[#allocation6] sm:$0x1]
    %v202 = vadd.f32 %v201, %v200
    %203 = vst.msk [vmem:[#allocation6] sm:$0x1] %vm109, %v202
    // Predicated region
    $region22: #{_combo_loss_fn.1} parent=1 // pred_check
      _
    $region23: #{_combo_loss_fn.1} parent=1 // pred_check_branch
      %205 = sbr.rel (0) target = $region25
    $region24: #{_combo_loss_fn.1} parent=1 // pred_region
      %s207 = ssub.s32 16, 16
      %208 = vsyncadd [#allocation3], %s207
      %s210 = sshll.u32 [#allocation2], 4
      %s211 = int_to_ptr.vmem [resolvable:$true] %s210
      %213 = dma.vmem_to_hbm [thread:$0]  %s211, 16, %s4, [#allocation3]
    $region25: #{_combo_loss_fn.1} parent=1 // pred_fallthru
      _
    // Predicated region
    $region26: #{_combo_loss_fn.1} parent=1 // pred_check
      _
    $region27: #{_combo_loss_fn.1} parent=1 // pred_check_branch
      %215 = sbr.rel (0) target = $region29
    $region28: #{_combo_loss_fn.1} parent=1 // pred_region
      %s217 = ssub.s32 16, 16
      %218 = vsyncadd [#allocation5], %s217
      %s220 = sshll.u32 [#allocation4], 4
      %s221 = int_to_ptr.vmem [resolvable:$true] %s220
      %223 = dma.vmem_to_hbm [thread:$0]  %s221, 16, %s5, [#allocation5]
    $region29: #{_combo_loss_fn.1} parent=1 // pred_fallthru
      _
    // Predicated region
    $region30: #{_combo_loss_fn.1} parent=1 // pred_check
      _
    $region31: #{_combo_loss_fn.1} parent=1 // pred_check_branch
      %225 = sbr.rel (0) target = $region33
    $region32: #{_combo_loss_fn.1} parent=1 // pred_region
      %s227 = ssub.s32 16, 16
      %228 = vsyncadd [#allocation5], %s227
      %s230 = sshll.u32 [#allocation6], 4
      %s231 = int_to_ptr.vmem [resolvable:$true] %s230
      %233 = dma.vmem_to_hbm [thread:$0]  %s231, 16, %s6, [#allocation5]
    $region33: #{_combo_loss_fn.1} parent=1 // pred_fallthru
      _
    // Predicated region
    $region34: #{_combo_loss_fn.1} parent=1 // pred_check
      _
    $region35: #{_combo_loss_fn.1} parent=1 // pred_check_branch
      %235 = sbr.rel (0) target = $region37
    $region36: #{_combo_loss_fn.1} parent=1 // pred_region
      %236 = dma.done [#allocation3], 16
    $region37: #{_combo_loss_fn.1} parent=1 // pred_fallthru
      _
    // Predicated region
    $region38: #{_combo_loss_fn.1} parent=1 // pred_check
      _
    $region39: #{_combo_loss_fn.1} parent=1 // pred_check_branch
      %238 = sbr.rel (0) target = $region41
    $region40: #{_combo_loss_fn.1} parent=1 // pred_region
      %239 = dma.done [#allocation5], 16
    $region41: #{_combo_loss_fn.1} parent=1 // pred_fallthru
      _
    // Predicated region
    $region42: #{_combo_loss_fn.1} parent=1 // pred_check
      _
    $region43: #{_combo_loss_fn.1} parent=1 // pred_check_branch
      %241 = sbr.rel (0) target = $region45
    $region44: #{_combo_loss_fn.1} parent=1 // pred_region
      %242 = dma.done [#allocation5], 16
    $region45: #{_combo_loss_fn.1} parent=1 // pred_fallthru
      _
    %243 = vsyncpa [#allocation3], 1
    %244 = vsyncpa [#allocation5], 1

</llo_original>
